<compile_context>
chip_gen: v7x
topology: tpu7x:2x2x1
jax: 0.10.0
libtpu: 0.0.40
codegen_flags: <defaults>
</compile_context>

<pallas_src>
import functools

import jax
import jax.numpy as jnp
from jax.experimental import pallas as pl
from jax.experimental.pallas import tpu as pltpu

NEG_SLOPE = 0.01  # torch.nn.LeakyReLU default negative_slope


def _round_up(x, m):
    return ((x + m - 1) // m) * m


def _leaky_relu(x):
    # max(x, a*x) == leaky_relu(x) for 0 < a < 1: one vmul + vmax on the VPU.
    return jnp.maximum(x, NEG_SLOPE * x)


def edgeconv_mlp_kernel(x_ref, w1_ref, b1_ref, w2_ref, b2_ref, o_ref):
    # x tile arrives in the caller dtype (f32); cast to the matmul dtype in VMEM.
    x = x_ref[...].astype(w1_ref.dtype)
    h = jnp.dot(x, w1_ref[...], preferred_element_type=jnp.float32)   # MXU, f32 acc
    h = _leaky_relu(h + b1_ref[...])                                  # f32 VPU
    y = jnp.dot(h.astype(w2_ref.dtype), w2_ref[...],
                preferred_element_type=jnp.float32)
    y = _leaky_relu(y + b2_ref[...])
    o_ref[...] = y.astype(o_ref.dtype)


def _min_grid_steps():
    """Keep >=2 pipelined steps per TensorCore; v7x has 2 TCs on the parallel axis."""
    try:
        kind = jax.devices()[0].device_kind.lower()
    except Exception:  # pragma: no cover - defensive
        kind = ""
    return 4 if ("v7" in kind or "7x" in kind) else 2


def _pick_pack_factor(n, dim_in, dim_hidden, dim_out):
    """Edge rows packed per lane row: must divide N, keep block-diag weights small."""
    max_dim = max(dim_in, dim_hidden, dim_out)
    for p in (16, 8, 4, 2, 1):
        if n % p == 0 and p * max_dim <= 2048:
            return p
    return 1


def _vmem_limit_bytes(tile_p, pdi, pdh, pdo, x_bytes, w_bytes, out_bytes):
    """Lane-padded, double-buffered footprint, ~2x headroom, clamped to <=32 MiB."""
    lane = lambda d: _round_up(d, 128)
    est = (
        2 * tile_p * lane(pdi) * x_bytes          # x tile (double-buffered)
        + 2 * tile_p * lane(pdo) * out_bytes      # out tile (double-buffered)
        + tile_p * lane(pdi) * w_bytes            # in-kernel bf16 cast of x
        + tile_p * lane(pdh) * (4 + w_bytes)      # hidden f32 + recast for matmul 2
        + tile_p * lane(pdo) * 4                  # y in f32 before the final cast
        + 2 * lane(pdi) * lane(pdh) * w_bytes     # W1 block-diag (double-buffered)
        + 2 * lane(pdh) * lane(pdo) * w_bytes     # W2 block-diag (double-buffered)
        + 2 * 8 * (lane(pdh) + lane(pdo)) * 4     # biases (sublane-padded)
    )
    return int(min(max(2 * est + (4 << 20), 8 << 20), 32 << 20))


@functools.partial(jax.jit, static_argnames=("tm", "out_dtype", "use_bf16_matmul"))
def edgeconv_mlp(x, w1, b1, w2, b2, *, tm=8192, out_dtype=None, use_bf16_matmul=True):
    """x: (N, dim_in); w1: (dim_in, dim_hidden); w2: (dim_hidden, dim_out).

    Returns (N, dim_out) in `out_dtype` (default: x.dtype; bf16 allowed when the
    consumer tolerates it).  tm = requested row tile in edges per grid step.
    use_bf16_matmul=True streams x/W through the MXU in bf16 with f32 accumulation
    (bias add + LeakyReLU stay f32); set False for a bit-faithful f32 forward.
    """
    n, dim_in = x.shape
    dim_hidden = w1.shape[1]
    dim_out = w2.shape[1]
    if out_dtype is None:
        out_dtype = x.dtype
    mm_dtype = jnp.bfloat16 if use_bf16_matmul else jnp.float32

    # ---- Row packing: P edge rows per lane row, block-diagonal weights. --------
    p = _pick_pack_factor(n, dim_in, dim_hidden, dim_out)
    n_p = n // p
    pdi, pdh, pdo = p * dim_in, p * dim_hidden, p * dim_out

    x_p = x.reshape(n_p, pdi)                       # free contiguous view, no copy
    eye = jnp.eye(p, dtype=mm_dtype)
    w1_blk = jnp.kron(eye, w1.astype(mm_dtype))     # (pdi, pdh), tiny & resident
    w2_blk = jnp.kron(eye, w2.astype(mm_dtype))     # (pdh, pdo), tiny & resident
    b1_blk = jnp.tile(b1.reshape(1, dim_hidden).astype(jnp.float32), (1, p))
    b2_blk = jnp.tile(b2.reshape(1, dim_out).astype(jnp.float32), (1, p))

    # ---- Row tile: big enough to hide per-step overhead, >=2 steps per TC. -----
    min_steps = _min_grid_steps()
    tile_p = max(8, _round_up(max(tm // p, 1), 8))
    cap = _round_up(-(-n_p // min_steps), 8)        # ceil-div, sublane rounded
    tile_p = max(8, min(tile_p, cap))
    if tile_p >= n_p:
        tile_p = n_p                                # single full-extent block
    grid = (pl.cdiv(n_p, tile_p),)                  # partial tail block is masked

    out_bytes = jnp.dtype(out_dtype).itemsize
    cost = pl.CostEstimate(
        flops=2 * n_p * (pdi * pdh + pdh * pdo),
        transcendentals=0,
        bytes_accessed=(x.size * x.dtype.itemsize
                        + w1_blk.size * jnp.dtype(mm_dtype).itemsize
                        + w2_blk.size * jnp.dtype(mm_dtype).itemsize
                        + b1_blk.size * 4 + b2_blk.size * 4
                        + n * dim_out * out_bytes),
    )

    out_p = pl.pallas_call(
        edgeconv_mlp_kernel,
        out_shape=jax.ShapeDtypeStruct((n_p, pdo), out_dtype),
        grid_spec=pl.GridSpec(
            grid=grid,
            in_specs=[
                pl.BlockSpec((tile_p, pdi), lambda i: (i, 0)),   # packed x row-tile
                pl.BlockSpec((pdi, pdh), lambda i: (0, 0)),      # W1 block-diag
                pl.BlockSpec((1, pdh), lambda i: (0, 0)),        # b1 (tiled)
                pl.BlockSpec((pdh, pdo), lambda i: (0, 0)),      # W2 block-diag
                pl.BlockSpec((1, pdo), lambda i: (0, 0)),        # b2 (tiled)
            ],
            out_specs=pl.BlockSpec((tile_p, pdo), lambda i: (i, 0)),
        ),
        compiler_params=pltpu.CompilerParams(
            dimension_semantics=("parallel",),
            vmem_limit_bytes=_vmem_limit_bytes(
                tile_p, pdi, pdh, pdo,
                x.dtype.itemsize, jnp.dtype(mm_dtype).itemsize, out_bytes),
        ),
        cost_estimate=cost,
    )(x_p, w1_blk, b1_blk, w2_blk, b2_blk)

    return out_p.reshape(n, dim_out)                # free contiguous view, no copy


def init_params(key, dim_in, dim_hidden, dim_out, dtype=jnp.float32):
    """torch.nn.Linear default init (uniform +/- 1/sqrt(fan_in)); weights are (in, out)."""
    k1, k2, k3, k4 = jax.random.split(key, 4)
    bound1 = 1.0 / jnp.sqrt(dim_in)
    bound2 = 1.0 / jnp.sqrt(dim_hidden)
    w1 = jax.random.uniform(k1, (dim_in, dim_hidden), dtype, -bound1, bound1)
    b1 = jax.random.uniform(k2, (1, dim_hidden), dtype, -bound1, bound1)
    w2 = jax.random.uniform(k3, (dim_hidden, dim_out), dtype, -bound2, bound2)
    b2 = jax.random.uniform(k4, (1, dim_out), dtype, -bound2, bound2)
    return w1, b1, w2, b2


def reference_mlp_matched(x, w1, b1, w2, b2):
    """Reference with the kernel's bf16-input / f32-accumulate precision contract."""
    xb = x.astype(jnp.bfloat16)
    w1b = w1.astype(jnp.bfloat16)
    w2b = w2.astype(jnp.bfloat16)
    h = jnp.dot(xb, w1b, preferred_element_type=jnp.float32) + b1
    h = jnp.maximum(h, NEG_SLOPE * h)
    y = jnp.dot(h.astype(jnp.bfloat16), w2b, preferred_element_type=jnp.float32) + b2
    return jnp.maximum(y, NEG_SLOPE * y)


def reference_mlp_f32(x, w1, b1, w2, b2):
    h = x @ w1 + b1
    h = jnp.where(h > 0, h, NEG_SLOPE * h)
    y = h @ w2 + b2
    return jnp.where(y > 0, y, NEG_SLOPE * y)


if __name__ == "__main__":
    # Small shapes consistent with the module: N "edges", dim_in -> dim_hidden -> dim_out.
    N, DIM_IN, DIM_HIDDEN, DIM_OUT = 256, 16, 32, 24

    key = jax.random.PRNGKey(0)
    kx, kp, kx2 = jax.random.split(key, 3)
    x = jax.random.normal(kx, (N, DIM_IN), jnp.float32)
    w1, b1, w2, b2 = init_params(kp, DIM_IN, DIM_HIDDEN, DIM_OUT)

    # Lane-dense path: P=16 rows/lane-row -> packed dims 256/512/384, grid of 2.
    out = jax.block_until_ready(edgeconv_mlp(x, w1, b1, w2, b2))
    assert out.shape == (N, DIM_OUT)
    assert out.dtype == x.dtype

    ref_m = reference_mlp_matched(x, w1, b1, w2, b2)
    assert jnp.allclose(out, ref_m, atol=2e-3, rtol=2e-3), "mismatch vs matched reference"
    ref_f = reference_mlp_f32(x, w1, b1, w2, b2)
    assert jnp.allclose(out, ref_f, atol=5e-2, rtol=5e-2), "mismatch vs f32 reference"

    # Non-divisible path: N=200 -> P=8, 25 packed rows, cdiv grid with a masked
    # partial tail block (exercises Pallas edge-block masking, no pad/slice).
    N2 = 200
    x2 = jax.random.normal(kx2, (N2, DIM_IN), jnp.float32)
    out2 = jax.block_until_ready(edgeconv_mlp(x2, w1, b1, w2, b2))
    assert out2.shape == (N2, DIM_OUT)
    assert jnp.allclose(out2, reference_mlp_matched(x2, w1, b1, w2, b2),
                        atol=2e-3, rtol=2e-3), "mismatch on non-divisible N"

    print("KERNEL_OK")
</pallas_src>

<mosaic_0001>
module attributes {stable_mosaic.version = 11 : i64} {
  func.func @edgeconv_mlp_kernel(%arg0: i32, %arg1: memref<8x256xf32, #tpu.memory_space<vmem>>, %arg2: memref<256x512xbf16, #tpu.memory_space<vmem>>, %arg3: memref<1x512xf32, #tpu.memory_space<vmem>>, %arg4: memref<512x384xbf16, #tpu.memory_space<vmem>>, %arg5: memref<1x384xf32, #tpu.memory_space<vmem>>, %arg6: memref<8x384xf32, #tpu.memory_space<vmem>>) attributes {dimension_semantics = [#tpu.dimension_semantics<parallel>], iteration_bounds = array<i64: 2>, scalar_prefetch = 0 : i64, scratch_operands = 0 : i64, tpu.core_type = #tpu.core_type<tc>, window_params = [{transform_indices = @transform_0, window_bounds = array<i64: 8, 256>}, {pipeline_mode = #tpu.pipeline_mode<synchronous>, transform_indices = @transform_1, window_bounds = array<i64: 256, 512>}, {pipeline_mode = #tpu.pipeline_mode<synchronous>, transform_indices = @transform_2, window_bounds = array<i64: 1, 512>}, {pipeline_mode = #tpu.pipeline_mode<synchronous>, transform_indices = @transform_3, window_bounds = array<i64: 512, 384>}, {pipeline_mode = #tpu.pipeline_mode<synchronous>, transform_indices = @transform_4, window_bounds = array<i64: 1, 384>}, {transform_indices = @transform_5, window_bounds = array<i64: 8, 384>}]} {
    %c0 = arith.constant 0 : index
    %c0_0 = arith.constant 0 : index
    %0 = vector.load %arg1[%c0, %c0_0] : memref<8x256xf32, #tpu.memory_space<vmem>>, vector<8x256xf32>
    %1 = arith.truncf %0 : vector<8x256xf32> to vector<8x256xbf16>
    %c0_1 = arith.constant 0 : index
    %c0_2 = arith.constant 0 : index
    %2 = vector.load %arg2[%c0_1, %c0_2] : memref<256x512xbf16, #tpu.memory_space<vmem>>, vector<256x512xbf16>
    %cst = arith.constant dense<0.000000e+00> : vector<8x512xf32>
    %3 = tpu.matmul %1, %2, %cst {dimension_numbers = #tpu.dot_dimension_numbers<[1], [0], [0], [1], [0, 0, 1, 1], [], []>} : vector<8x256xbf16>, vector<256x512xbf16>, vector<8x512xf32> -> vector<8x512xf32>
    %c0_3 = arith.constant 0 : index
    %c0_4 = arith.constant 0 : index
    %4 = vector.load %arg3[%c0_3, %c0_4] : memref<1x512xf32, #tpu.memory_space<vmem>>, vector<1x512xf32>
    %5 = vector.broadcast %4 : vector<1x512xf32> to vector<8x512xf32>
    %6 = arith.addf %3, %5 : vector<8x512xf32>
    %cst_5 = arith.constant 0.00999999977 : f32
    %7 = vector.broadcast %cst_5 : f32 to vector<8x512xf32>
    %8 = arith.mulf %7, %6 : vector<8x512xf32>
    %9 = arith.maximumf %6, %8 : vector<8x512xf32>
    %10 = arith.truncf %9 : vector<8x512xf32> to vector<8x512xbf16>
    %c0_6 = arith.constant 0 : index
    %c0_7 = arith.constant 0 : index
    %11 = vector.load %arg4[%c0_6, %c0_7] : memref<512x384xbf16, #tpu.memory_space<vmem>>, vector<512x384xbf16>
    %cst_8 = arith.constant dense<0.000000e+00> : vector<8x384xf32>
    %12 = tpu.matmul %10, %11, %cst_8 {dimension_numbers = #tpu.dot_dimension_numbers<[1], [0], [0], [1], [0, 0, 1, 1], [], []>} : vector<8x512xbf16>, vector<512x384xbf16>, vector<8x384xf32> -> vector<8x384xf32>
    %c0_9 = arith.constant 0 : index
    %c0_10 = arith.constant 0 : index
    %13 = vector.load %arg5[%c0_9, %c0_10] : memref<1x384xf32, #tpu.memory_space<vmem>>, vector<1x384xf32>
    %14 = vector.broadcast %13 : vector<1x384xf32> to vector<8x384xf32>
    %15 = arith.addf %12, %14 : vector<8x384xf32>
    %cst_11 = arith.constant 0.00999999977 : f32
    %16 = vector.broadcast %cst_11 : f32 to vector<8x384xf32>
    %17 = arith.mulf %16, %15 : vector<8x384xf32>
    %18 = arith.maximumf %15, %17 : vector<8x384xf32>
    %c0_12 = arith.constant 0 : index
    %c0_13 = arith.constant 0 : index
    %19 = vector.load %arg6[%c0_12, %c0_13] : memref<8x384xf32, #tpu.memory_space<vmem>>, vector<8x384xf32>
    tpu.vector_store %arg6[%c0_12, %c0_13], %18 {strides = array<i32>} : memref<8x384xf32, #tpu.memory_space<vmem>>, vector<8x384xf32>,
    return
  }
  func.func @transform_0(%arg0: i32) -> (i32, i32) {
    %c0_i32 = arith.constant 0 : i32
    %c0_i32_0 = arith.constant 0 : i32
    return %arg0, %c0_i32 : i32, i32
  }
  func.func @transform_1(%arg0: i32) -> (i32, i32) {
    %c0_i32 = arith.constant 0 : i32
    %c0_i32_0 = arith.constant 0 : i32
    %c0_i32_1 = arith.constant 0 : i32
    return %c0_i32, %c0_i32_0 : i32, i32
  }
  func.func @transform_2(%arg0: i32) -> (i32, i32) {
    %c0_i32 = arith.constant 0 : i32
    %c0_i32_0 = arith.constant 0 : i32
    %c0_i32_1 = arith.constant 0 : i32
    return %c0_i32, %c0_i32_0 : i32, i32
  }
  func.func @transform_3(%arg0: i32) -> (i32, i32) {
    %c0_i32 = arith.constant 0 : i32
    %c0_i32_0 = arith.constant 0 : i32
    %c0_i32_1 = arith.constant 0 : i32
    return %c0_i32, %c0_i32_0 : i32, i32
  }
  func.func @transform_4(%arg0: i32) -> (i32, i32) {
    %c0_i32 = arith.constant 0 : i32
    %c0_i32_0 = arith.constant 0 : i32
    %c0_i32_1 = arith.constant 0 : i32
    return %c0_i32, %c0_i32_0 : i32, i32
  }
  func.func @transform_5(%arg0: i32) -> (i32, i32) {
    %c0_i32 = arith.constant 0 : i32
    %c0_i32_0 = arith.constant 0 : i32
    return %arg0, %c0_i32 : i32, i32
  }
}

</mosaic_0001>

<llo_original>
// kernel: edgeconv_mlp.1
$region0: #{edgeconv_mlp.1}
  #allocation0 [shape = 'u32[]', space=smem, size = 0x4, offset = 0x4, fixed_abs, tag = 'smem constant byte address 0x4 - core index']
  #allocation1 [shape = 'u32[144,128]{1,0:T(1,128)}', space=vmem, size = 0x12000, scoped, tag = 'internal scratch']
  %s0 = inlined_call_operand.vmem [shape: f32[16,256], index: 0, kind: input, shape index: {}]
  %s1 = inlined_call_operand.vmem [shape: bf16[256,512], index: 1, kind: input, shape index: {}]
  %s2 = inlined_call_operand.vmem [shape: f32[1,512], index: 2, kind: input, shape index: {}]
  %s3 = inlined_call_operand.vmem [shape: bf16[512,384], index: 3, kind: input, shape index: {}]
  %s4 = inlined_call_operand.vmem [shape: f32[1,384], index: 4, kind: input, shape index: {}]
  %s5 = inlined_call_operand.vmem [shape: f32[16,384], index: 5, kind: output, shape index: {}]
  %s6 = sld [smem:[#allocation0]]
  $region53: #{edgeconv_mlp.1} parent=0
    _
  %s8 = ssub.s32 1, %s6
  %s9 = scalar_select 0, %s8, %s6
  loop: start=0, step=1, limit=4
  $region2: #{edgeconv_mlp.1} parent=0 // loop_pre_header
    _
  $region3: #{edgeconv_mlp.1} parent=0 // loop_header
    %s11 = sphi 0, %s15
    %p12 = scmp.ge.s32.totalorder %s11, 4
    %s21 = sphi 0, %s23
    %s24 = sphi 0, %s21
    %s25 = sphi 0, %s24
    %s41 = sphi 0, %s25
    %s45 = sphi 0, %s45
    %s47 = sphi 0, %s45
    %s48 = sphi 0, %s47
    %s62 = sphi 0, %s48
    %s66 = sphi 0, %s66
    %s68 = sphi 0, %s66
    %s69 = sphi 0, %s68
    %s83 = sphi 0, %s69
    %s87 = sphi 0, %s87
    %s89 = sphi 0, %s87
    %s90 = sphi 0, %s89
    %s104 = sphi 0, %s90
    %s108 = sphi 0, %s108
    %s110 = sphi 0, %s108
    %s111 = sphi 0, %s110
    %s125 = sphi 0, %s111
    %s131 = sphi 0, %s133
    %s134 = sphi 0, %s131
    %s135 = sphi 0, %s134
    %s151 = sphi 0, %s135
  $region4: #{edgeconv_mlp.1} parent=0 // loop_header_branch
    %14 = sbr.rel (%p12) target = $region8
  $region5: #{edgeconv_mlp.1} parent=0 // loop_body
    %s16 = ssub.s32 %s11, 1
    %s17 = ssub.s32 %s11, 2
    %s18 = sadd.s32 %s11, 1
    %s19 = ssub.s32 %s11, %s18
    %p20 = scmp.eq.s32.totalorder %s19, 0
    %s22 = sadd.s32 %s21, 1
    %s23 = scalar_select %p20, %s21, %s22
    %p26 = pneg %p20
    %p27 = scmp.eq.s32.totalorder %s11, 1
    %p28 = por %p26, %p27
    %p29 = scmp.ne.s32.totalorder %s21, %s24
    %p30 = scmp.eq.s32.totalorder %s11, 0
    %p31 = por %p29, %p30
    %p32 = scmp.ne.s32.totalorder %s21, %s24
    %p33 = scmp.eq.s32.totalorder %s16, 1
    %p34 = por %p32, %p33
    %p35 = scmp.ne.s32.totalorder %s24, %s25
    %p36 = scmp.eq.s32.totalorder %s16, 0
    %p37 = por %p35, %p36
    %p38 = scmp.ne.s32.totalorder %s24, %s25
    %p39 = scmp.eq.s32.totalorder %s17, 1
    %p40 = por %p38, %p39
    %p42 = scmp.ne.s32.totalorder %s25, %s41
    %p43 = scmp.eq.s32.totalorder %s17, 0
    %p44 = por %p42, %p43
    %s46 = sadd.s32 %s45, 1
    %p49 = scmp.eq.s32.totalorder %s11, 1
    %p50 = scmp.ne.s32.totalorder %s45, %s47
    %p51 = scmp.eq.s32.totalorder %s11, 0
    %p52 = por %p50, %p51
    %p53 = scmp.ne.s32.totalorder %s45, %s47
    %p54 = scmp.eq.s32.totalorder %s16, 1
    %p55 = por %p53, %p54
    %p56 = scmp.ne.s32.totalorder %s47, %s48
    %p57 = scmp.eq.s32.totalorder %s16, 0
    %p58 = por %p56, %p57
    %p59 = scmp.ne.s32.totalorder %s47, %s48
    %p60 = scmp.eq.s32.totalorder %s17, 1
    %p61 = por %p59, %p60
    %p63 = scmp.ne.s32.totalorder %s48, %s62
    %p64 = scmp.eq.s32.totalorder %s17, 0
    %p65 = por %p63, %p64
    %s67 = sadd.s32 %s66, 1
    %p70 = scmp.eq.s32.totalorder %s11, 1
    %p71 = scmp.ne.s32.totalorder %s66, %s68
    %p72 = scmp.eq.s32.totalorder %s11, 0
    %p73 = por %p71, %p72
    %p74 = scmp.ne.s32.totalorder %s66, %s68
    %p75 = scmp.eq.s32.totalorder %s16, 1
    %p76 = por %p74, %p75
    %p77 = scmp.ne.s32.totalorder %s68, %s69
    %p78 = scmp.eq.s32.totalorder %s16, 0
    %p79 = por %p77, %p78
    %p80 = scmp.ne.s32.totalorder %s68, %s69
    %p81 = scmp.eq.s32.totalorder %s17, 1
    %p82 = por %p80, %p81
    %p84 = scmp.ne.s32.totalorder %s69, %s83
    %p85 = scmp.eq.s32.totalorder %s17, 0
    %p86 = por %p84, %p85
    %s88 = sadd.s32 %s87, 1
    %p91 = scmp.eq.s32.totalorder %s11, 1
    %p92 = scmp.ne.s32.totalorder %s87, %s89
    %p93 = scmp.eq.s32.totalorder %s11, 0
    %p94 = por %p92, %p93
    %p95 = scmp.ne.s32.totalorder %s87, %s89
    %p96 = scmp.eq.s32.totalorder %s16, 1
    %p97 = por %p95, %p96
    %p98 = scmp.ne.s32.totalorder %s89, %s90
    %p99 = scmp.eq.s32.totalorder %s16, 0
    %p100 = por %p98, %p99
    %p101 = scmp.ne.s32.totalorder %s89, %s90
    %p102 = scmp.eq.s32.totalorder %s17, 1
    %p103 = por %p101, %p102
    %p105 = scmp.ne.s32.totalorder %s90, %s104
    %p106 = scmp.eq.s32.totalorder %s17, 0
    %p107 = por %p105, %p106
    %s109 = sadd.s32 %s108, 1
    %p112 = scmp.eq.s32.totalorder %s11, 1
    %p113 = scmp.ne.s32.totalorder %s108, %s110
    %p114 = scmp.eq.s32.totalorder %s11, 0
    %p115 = por %p113, %p114
    %p116 = scmp.ne.s32.totalorder %s108, %s110
    %p117 = scmp.eq.s32.totalorder %s16, 1
    %p118 = por %p116, %p117
    %p119 = scmp.ne.s32.totalorder %s110, %s111
    %p120 = scmp.eq.s32.totalorder %s16, 0
    %p121 = por %p119, %p120
    %p122 = scmp.ne.s32.totalorder %s110, %s111
    %p123 = scmp.eq.s32.totalorder %s17, 1
    %p124 = por %p122, %p123
    %p126 = scmp.ne.s32.totalorder %s111, %s125
    %p127 = scmp.eq.s32.totalorder %s17, 0
    %p128 = por %p126, %p127
    %s129 = ssub.s32 %s11, %s18
    %p130 = scmp.eq.s32.totalorder %s129, 0
    %s132 = sadd.s32 %s131, 1
    %s133 = scalar_select %p130, %s131, %s132
    %p136 = pneg %p130
    %p137 = scmp.eq.s32.totalorder %s11, 1
    %p138 = por %p136, %p137
    %p139 = scmp.ne.s32.totalorder %s131, %s134
    %p140 = scmp.eq.s32.totalorder %s11, 0
    %p141 = por %p139, %p140
    %p142 = scmp.ne.s32.totalorder %s131, %s134
    %p143 = scmp.eq.s32.totalorder %s16, 1
    %p144 = por %p142, %p143
    %p145 = scmp.ne.s32.totalorder %s134, %s135
    %p146 = scmp.eq.s32.totalorder %s16, 0
    %p147 = por %p145, %p146
    %p148 = scmp.ne.s32.totalorder %s134, %s135
    %p149 = scmp.eq.s32.totalorder %s17, 1
    %p150 = por %p148, %p149
    %p152 = scmp.ne.s32.totalorder %s135, %s151
    %p153 = scmp.eq.s32.totalorder %s17, 0
    %p154 = por %p152, %p153
    %p155 = scmp.le.s32.totalorder 1, %s11
    %p156 = scmp.lt.s32.totalorder %s11, 3
    %p157 = pnand %p155, %p156
    %p158 = pneg %p157
    // Predicated region
    $region9: #{edgeconv_mlp.1} parent=5 // pred_check
      _
    $region10: #{edgeconv_mlp.1} parent=5 // pred_check_branch
      %160 = sbr.rel (%p157) target = $region12
    $region11: #{edgeconv_mlp.1} parent=5 // pred_region
      %s161 = ssub.s32 %s11, 1
      // Predicated region
      $region13: #{edgeconv_mlp.1} parent=11 // pred_check
        %p162 = pneg %p58
      $region14: #{edgeconv_mlp.1} parent=11 // pred_check_branch
        %164 = sbr.rel (%p162) target = $region16
      $region15: #{edgeconv_mlp.1} parent=11 // pred_region
        _
      $region16: #{edgeconv_mlp.1} parent=11 // pred_fallthru
        _
      // Predicated region
      $region17: #{edgeconv_mlp.1} parent=11 // pred_check
        %p165 = pneg %p79
      $region18: #{edgeconv_mlp.1} parent=11 // pred_check_branch
        %167 = sbr.rel (%p165) target = $region20
      $region19: #{edgeconv_mlp.1} parent=11 // pred_region
        _
      $region20: #{edgeconv_mlp.1} parent=11 // pred_fallthru
        _
      // Predicated region
      $region21: #{edgeconv_mlp.1} parent=11 // pred_check
        %p168 = pneg %p100
      $region22: #{edgeconv_mlp.1} parent=11 // pred_check_branch
        %170 = sbr.rel (%p168) target = $region24
      $region23: #{edgeconv_mlp.1} parent=11 // pred_region
        _
      $region24: #{edgeconv_mlp.1} parent=11 // pred_fallthru
        _
      // Predicated region
      $region25: #{edgeconv_mlp.1} parent=11 // pred_check
        %p171 = pneg %p121
      $region26: #{edgeconv_mlp.1} parent=11 // pred_check_branch
        %173 = sbr.rel (%p171) target = $region28
      $region27: #{edgeconv_mlp.1} parent=11 // pred_region
        _
      $region28: #{edgeconv_mlp.1} parent=11 // pred_fallthru
        _
    $region12: #{edgeconv_mlp.1} parent=5 // pred_fallthru
      _
    %p174 = scmp.lt.s32.totalorder %s11, 2
    // Predicated region
    $region29: #{edgeconv_mlp.1} parent=5 // pred_check
      %p175 = pneg %p174
    $region30: #{edgeconv_mlp.1} parent=5 // pred_check_branch
      %177 = sbr.rel (%p175) target = $region32
    $region31: #{edgeconv_mlp.1} parent=5 // pred_region
      // Predicated region
      $region33: #{edgeconv_mlp.1} parent=31 // pred_check
        %p178 = pneg %p31
      $region34: #{edgeconv_mlp.1} parent=31 // pred_check_branch
        %180 = sbr.rel (%p178) target = $region36
      $region35: #{edgeconv_mlp.1} parent=31 // pred_region
        %p181 = scmp.lt.s32.totalorder %s11, 1
        %s182 = scalar_select %p181, %s11, 1
        %s183 = smul.addr %s182, 2
        %s184 = smul.addr %s183, 8
        %s185 = scalar_lea.vmem %s0, %s184
      $region36: #{edgeconv_mlp.1} parent=31 // pred_fallthru
        _
    $region32: #{edgeconv_mlp.1} parent=5 // pred_fallthru
      _
    %p186 = scmp.le.s32.totalorder 1, %s11
    %p187 = scmp.lt.s32.totalorder %s11, 3
    %p188 = pnand %p186, %p187
    %p189 = pneg %p188
    // Predicated region
    $region37: #{edgeconv_mlp.1} parent=5 // pred_check
      _
    $region38: #{edgeconv_mlp.1} parent=5 // pred_check_branch
      %191 = sbr.rel (%p188) target = $region40
    $region39: #{edgeconv_mlp.1} parent=5 // pred_region
      %s192 = ssub.s32 %s11, 1
      %p193 = scmp.lt.s32.totalorder %s16, 1
      %s194 = scalar_select %p193, %s16, 1
      %s195 = smul.addr %s194, 2
      %s196 = smul.addr %s195, 8
      %s197 = scalar_lea.vmem %s0, %s196
      %p198 = pneg %p37
      %p199 = pneg %p34
      %p200 = pneg %p58
      %p201 = pneg %p55
      %p202 = pneg %p79
      %p203 = pneg %p76
      %p204 = pneg %p100
      %p205 = pneg %p97
      %p206 = pneg %p121
      %p207 = pneg %p118
      %p208 = pneg %p147
      %p209 = pneg %p144
      %p210 = scmp.lt.s32.totalorder %s16, 1
      %s211 = scalar_select %p210, %s16, 1
      %s212 = smul.addr %s211, 3
      %s213 = smul.addr %s212, 8
      %s214 = scalar_lea.vmem %s5, %s213
      %p215 = scmp.lt.s32.totalorder %s16, 1
      %s216 = scalar_select %p215, %s16, 1
      %s217 = smul.addr %s216, 2
      %s218 = smul.addr %s217, 8
      %s219 = scalar_lea.vmem %s0, %s218
      %p220 = scmp.lt.s32.totalorder %s16, 1
      %s221 = scalar_select %p220, %s16, 1
      %s222 = smul.addr %s221, 3
      %s223 = smul.addr %s222, 8
      %s224 = scalar_lea.vmem %s5, %s223
      %v226 = vld [vmem:[%s219] sm:$0xff]
      %v227 = vld [vmem:[%s219 + $0x8] sm:$0xff]
      %v228 = vpack.c.bf16 %v226, %v226
      %v229 = vpack.c.bf16 %v227, %v227
      %v230 = vld [vmem:[%s1] sm:$0xff]
      %v231 = vld [vmem:[%s1 + $0x8] sm:$0xff]
      %v232 = vld [vmem:[%s1 + $0x10] sm:$0xff]
      %v233 = vld [vmem:[%s1 + $0x18] sm:$0xff]
      %v234 = vld [vmem:[%s1 + $0x20] sm:$0xff]
      %v235 = vld [vmem:[%s1 + $0x28] sm:$0xff]
      %v236 = vld [vmem:[%s1 + $0x30] sm:$0xff]
      %v237 = vld [vmem:[%s1 + $0x38] sm:$0xff]
      %v238 = vld [vmem:[%s1 + $0x40] sm:$0xff]
      %v239 = vld [vmem:[%s1 + $0x48] sm:$0xff]
      %v240 = vld [vmem:[%s1 + $0x50] sm:$0xff]
      %v241 = vld [vmem:[%s1 + $0x58] sm:$0xff]
      %v242 = vld [vmem:[%s1 + $0x60] sm:$0xff]
      %v243 = vld [vmem:[%s1 + $0x68] sm:$0xff]
      %v244 = vld [vmem:[%s1 + $0x70] sm:$0xff]
      %v245 = vld [vmem:[%s1 + $0x78] sm:$0xff]
      %v246 = vld [vmem:[%s1 + $0x80] sm:$0xff]
      %v247 = vld [vmem:[%s1 + $0x88] sm:$0xff]
      %v248 = vld [vmem:[%s1 + $0x90] sm:$0xff]
      %v249 = vld [vmem:[%s1 + $0x98] sm:$0xff]
      %v250 = vld [vmem:[%s1 + $0xa0] sm:$0xff]
      %v251 = vld [vmem:[%s1 + $0xa8] sm:$0xff]
      %v252 = vld [vmem:[%s1 + $0xb0] sm:$0xff]
      %v253 = vld [vmem:[%s1 + $0xb8] sm:$0xff]
      %v254 = vld [vmem:[%s1 + $0xc0] sm:$0xff]
      %v255 = vld [vmem:[%s1 + $0xc8] sm:$0xff]
      %v256 = vld [vmem:[%s1 + $0xd0] sm:$0xff]
      %v257 = vld [vmem:[%s1 + $0xd8] sm:$0xff]
      %v258 = vld [vmem:[%s1 + $0xe0] sm:$0xff]
      %v259 = vld [vmem:[%s1 + $0xe8] sm:$0xff]
      %v260 = vld [vmem:[%s1 + $0xf0] sm:$0xff]
      %v261 = vld [vmem:[%s1 + $0xf8] sm:$0xff]
      %v262 = vld [vmem:[%s1 + $0x100] sm:$0xff]
      %v263 = vld [vmem:[%s1 + $0x108] sm:$0xff]
      %v264 = vld [vmem:[%s1 + $0x110] sm:$0xff]
      %v265 = vld [vmem:[%s1 + $0x118] sm:$0xff]
      %v266 = vld [vmem:[%s1 + $0x120] sm:$0xff]
      %v267 = vld [vmem:[%s1 + $0x128] sm:$0xff]
      %v268 = vld [vmem:[%s1 + $0x130] sm:$0xff]
      %v269 = vld [vmem:[%s1 + $0x138] sm:$0xff]
      %v270 = vld [vmem:[%s1 + $0x140] sm:$0xff]
      %v271 = vld [vmem:[%s1 + $0x148] sm:$0xff]
      %v272 = vld [vmem:[%s1 + $0x150] sm:$0xff]
      %v273 = vld [vmem:[%s1 + $0x158] sm:$0xff]
      %v274 = vld [vmem:[%s1 + $0x160] sm:$0xff]
      %v275 = vld [vmem:[%s1 + $0x168] sm:$0xff]
      %v276 = vld [vmem:[%s1 + $0x170] sm:$0xff]
      %v277 = vld [vmem:[%s1 + $0x178] sm:$0xff]
      %v278 = vld [vmem:[%s1 + $0x180] sm:$0xff]
      %v279 = vld [vmem:[%s1 + $0x188] sm:$0xff]
      %v280 = vld [vmem:[%s1 + $0x190] sm:$0xff]
      %v281 = vld [vmem:[%s1 + $0x198] sm:$0xff]
      %v282 = vld [vmem:[%s1 + $0x1a0] sm:$0xff]
      %v283 = vld [vmem:[%s1 + $0x1a8] sm:$0xff]
      %v284 = vld [vmem:[%s1 + $0x1b0] sm:$0xff]
      %v285 = vld [vmem:[%s1 + $0x1b8] sm:$0xff]
      %v286 = vld [vmem:[%s1 + $0x1c0] sm:$0xff]
      %v287 = vld [vmem:[%s1 + $0x1c8] sm:$0xff]
      %v288 = vld [vmem:[%s1 + $0x1d0] sm:$0xff]
      %v289 = vld [vmem:[%s1 + $0x1d8] sm:$0xff]
      %v290 = vld [vmem:[%s1 + $0x1e0] sm:$0xff]
      %v291 = vld [vmem:[%s1 + $0x1e8] sm:$0xff]
      %v292 = vld [vmem:[%s1 + $0x1f0] sm:$0xff]
      %v293 = vld [vmem:[%s1 + $0x1f8] sm:$0xff]
      %v294 = vld [vmem:[%s2] sm:$0xf]
      %v296 = vlaneseq
      %v297 = vshrl.u32 %v296, 7
      %v298 = vsub.s32 0, %v297
      %v299 = vrot.slane %v294, %v298
      %v300 = vlaneseq
      %v301 = vshrl.u32 %v300, 7
      %v302 = vsub.s32 1, %v301
      %v303 = vrot.slane %v294, %v302
      %v304 = vlaneseq
      %v305 = vshrl.u32 %v304, 7
      %v306 = vsub.s32 2, %v305
      %v307 = vrot.slane %v294, %v306
      %v308 = vlaneseq
      %v309 = vshrl.u32 %v308, 7
      %v310 = vsub.s32 3, %v309
      %v311 = vrot.slane %v294, %v310
      %v380 = vunpack.c.l.b16 %v230
      %v381 = vunpack.c.h.b16 %v230
      %v382 = vunpack.c.l.b16 %v231
      %v383 = vunpack.c.h.b16 %v231
      %v384 = vunpack.c.l.b16 %v232
      %v385 = vunpack.c.h.b16 %v232
      %v386 = vunpack.c.l.b16 %v233
      %v387 = vunpack.c.h.b16 %v233
      %v388 = vunpack.c.l.b16 %v234
      %v389 = vunpack.c.h.b16 %v234
      %v390 = vunpack.c.l.b16 %v235
      %v391 = vunpack.c.h.b16 %v235
      %v392 = vunpack.c.l.b16 %v236
      %v393 = vunpack.c.h.b16 %v236
      %v394 = vunpack.c.l.b16 %v237
      %v395 = vunpack.c.h.b16 %v237
      %v396 = vunpack.c.l.b16 %v238
      %v397 = vunpack.c.h.b16 %v238
      %v398 = vunpack.c.l.b16 %v239
      %v399 = vunpack.c.h.b16 %v239
      %v400 = vunpack.c.l.b16 %v240
      %v401 = vunpack.c.h.b16 %v240
      %v402 = vunpack.c.l.b16 %v241
      %v403 = vunpack.c.h.b16 %v241
      %v404 = vunpack.c.l.b16 %v242
      %v405 = vunpack.c.h.b16 %v242
      %v406 = vunpack.c.l.b16 %v243
      %v407 = vunpack.c.h.b16 %v243
      %v408 = vunpack.c.l.b16 %v244
      %v409 = vunpack.c.h.b16 %v244
      %v410 = vunpack.c.l.b16 %v245
      %v411 = vunpack.c.h.b16 %v245
      %v412 = vunpack.c.l.b16 %v246
      %v413 = vunpack.c.h.b16 %v246
      %v414 = vunpack.c.l.b16 %v247
      %v415 = vunpack.c.h.b16 %v247
      %v416 = vunpack.c.l.b16 %v248
      %v417 = vunpack.c.h.b16 %v248
      %v418 = vunpack.c.l.b16 %v249
      %v419 = vunpack.c.h.b16 %v249
      %v420 = vunpack.c.l.b16 %v250
      %v421 = vunpack.c.h.b16 %v250
      %v422 = vunpack.c.l.b16 %v251
      %v423 = vunpack.c.h.b16 %v251
      %v424 = vunpack.c.l.b16 %v252
      %v425 = vunpack.c.h.b16 %v252
      %v426 = vunpack.c.l.b16 %v253
      %v427 = vunpack.c.h.b16 %v253
      %v428 = vunpack.c.l.b16 %v254
      %v429 = vunpack.c.h.b16 %v254
      %v430 = vunpack.c.l.b16 %v255
      %v431 = vunpack.c.h.b16 %v255
      %v432 = vunpack.c.l.b16 %v256
      %v433 = vunpack.c.h.b16 %v256
      %v434 = vunpack.c.l.b16 %v257
      %v435 = vunpack.c.h.b16 %v257
      %v436 = vunpack.c.l.b16 %v258
      %v437 = vunpack.c.h.b16 %v258
      %v438 = vunpack.c.l.b16 %v259
      %v439 = vunpack.c.h.b16 %v259
      %v440 = vunpack.c.l.b16 %v260
      %v441 = vunpack.c.h.b16 %v260
      %v442 = vunpack.c.l.b16 %v261
      %v443 = vunpack.c.h.b16 %v261
      %v444 = vunpack.c.l.b16 %v262
      %v445 = vunpack.c.h.b16 %v262
      %v446 = vunpack.c.l.b16 %v263
      %v447 = vunpack.c.h.b16 %v263
      %v448 = vunpack.c.l.b16 %v264
      %v449 = vunpack.c.h.b16 %v264
      %v450 = vunpack.c.l.b16 %v265
      %v451 = vunpack.c.h.b16 %v265
      %v452 = vunpack.c.l.b16 %v266
      %v453 = vunpack.c.h.b16 %v266
      %v454 = vunpack.c.l.b16 %v267
      %v455 = vunpack.c.h.b16 %v267
      %v456 = vunpack.c.l.b16 %v268
      %v457 = vunpack.c.h.b16 %v268
      %v458 = vunpack.c.l.b16 %v269
      %v459 = vunpack.c.h.b16 %v269
      %v460 = vunpack.c.l.b16 %v270
      %v461 = vunpack.c.h.b16 %v270
      %v462 = vunpack.c.l.b16 %v271
      %v463 = vunpack.c.h.b16 %v271
      %v464 = vunpack.c.l.b16 %v272
      %v465 = vunpack.c.h.b16 %v272
      %v466 = vunpack.c.l.b16 %v273
      %v467 = vunpack.c.h.b16 %v273
      %v468 = vunpack.c.l.b16 %v274
      %v469 = vunpack.c.h.b16 %v274
      %v470 = vunpack.c.l.b16 %v275
      %v471 = vunpack.c.h.b16 %v275
      %v472 = vunpack.c.l.b16 %v276
      %v473 = vunpack.c.h.b16 %v276
      %v474 = vunpack.c.l.b16 %v277
      %v475 = vunpack.c.h.b16 %v277
      %v476 = vunpack.c.l.b16 %v278
      %v477 = vunpack.c.h.b16 %v278
      %v478 = vunpack.c.l.b16 %v279
      %v479 = vunpack.c.h.b16 %v279
      %v480 = vunpack.c.l.b16 %v280
      %v481 = vunpack.c.h.b16 %v280
      %v482 = vunpack.c.l.b16 %v281
      %v483 = vunpack.c.h.b16 %v281
      %v484 = vunpack.c.l.b16 %v282
      %v485 = vunpack.c.h.b16 %v282
      %v486 = vunpack.c.l.b16 %v283
      %v487 = vunpack.c.h.b16 %v283
      %v488 = vunpack.c.l.b16 %v284
      %v489 = vunpack.c.h.b16 %v284
      %v490 = vunpack.c.l.b16 %v285
      %v491 = vunpack.c.h.b16 %v285
      %v492 = vunpack.c.l.b16 %v286
      %v493 = vunpack.c.h.b16 %v286
      %v494 = vunpack.c.l.b16 %v287
      %v495 = vunpack.c.h.b16 %v287
      %v496 = vunpack.c.l.b16 %v288
      %v497 = vunpack.c.h.b16 %v288
      %v498 = vunpack.c.l.b16 %v289
      %v499 = vunpack.c.h.b16 %v289
      %v500 = vunpack.c.l.b16 %v290
      %v501 = vunpack.c.h.b16 %v290
      %v502 = vunpack.c.l.b16 %v291
      %v503 = vunpack.c.h.b16 %v291
      %v504 = vunpack.c.l.b16 %v292
      %v505 = vunpack.c.h.b16 %v292
      %v506 = vunpack.c.l.b16 %v293
      %v507 = vunpack.c.h.b16 %v293
      %v508 = vpack.c.b16 %v384, %v380
      %v509 = vpack.c.b16 %v385, %v381
      %v510 = vpack.c.b16 %v386, %v382
      %v511 = vpack.c.b16 %v387, %v383
      %v512 = vpack.c.b16 %v392, %v388
      %v513 = vpack.c.b16 %v393, %v389
      %v514 = vpack.c.b16 %v394, %v390
      %v515 = vpack.c.b16 %v395, %v391
      %v516 = vpack.c.b16 %v400, %v396
      %v517 = vpack.c.b16 %v401, %v397
      %v518 = vpack.c.b16 %v402, %v398
      %v519 = vpack.c.b16 %v403, %v399
      %v520 = vpack.c.b16 %v408, %v404
      %v521 = vpack.c.b16 %v409, %v405
      %v522 = vpack.c.b16 %v410, %v406
      %v523 = vpack.c.b16 %v411, %v407
      %v524 = vpack.c.b16 %v416, %v412
      %v525 = vpack.c.b16 %v417, %v413
      %v526 = vpack.c.b16 %v418, %v414
      %v527 = vpack.c.b16 %v419, %v415
      %v528 = vpack.c.b16 %v424, %v420
      %v529 = vpack.c.b16 %v425, %v421
      %v530 = vpack.c.b16 %v426, %v422
      %v531 = vpack.c.b16 %v427, %v423
      %v532 = vpack.c.b16 %v432, %v428
      %v533 = vpack.c.b16 %v433, %v429
      %v534 = vpack.c.b16 %v434, %v430
      %v535 = vpack.c.b16 %v435, %v431
      %v536 = vpack.c.b16 %v440, %v436
      %v537 = vpack.c.b16 %v441, %v437
      %v538 = vpack.c.b16 %v442, %v438
      %v539 = vpack.c.b16 %v443, %v439
      %v540 = vpack.c.b16 %v448, %v444
      %v541 = vpack.c.b16 %v449, %v445
      %v542 = vpack.c.b16 %v450, %v446
      %v543 = vpack.c.b16 %v451, %v447
      %v544 = vpack.c.b16 %v456, %v452
      %v545 = vpack.c.b16 %v457, %v453
      %v546 = vpack.c.b16 %v458, %v454
      %v547 = vpack.c.b16 %v459, %v455
      %v548 = vpack.c.b16 %v464, %v460
      %v549 = vpack.c.b16 %v465, %v461
      %v550 = vpack.c.b16 %v466, %v462
      %v551 = vpack.c.b16 %v467, %v463
      %v552 = vpack.c.b16 %v472, %v468
      %v553 = vpack.c.b16 %v473, %v469
      %v554 = vpack.c.b16 %v474, %v470
      %v555 = vpack.c.b16 %v475, %v471
      %v556 = vpack.c.b16 %v480, %v476
      %v557 = vpack.c.b16 %v481, %v477
      %v558 = vpack.c.b16 %v482, %v478
      %v559 = vpack.c.b16 %v483, %v479
      %v560 = vpack.c.b16 %v488, %v484
      %v561 = vpack.c.b16 %v489, %v485
      %v562 = vpack.c.b16 %v490, %v486
      %v563 = vpack.c.b16 %v491, %v487
      %v564 = vpack.c.b16 %v496, %v492
      %v565 = vpack.c.b16 %v497, %v493
      %v566 = vpack.c.b16 %v498, %v494
      %v567 = vpack.c.b16 %v499, %v495
      %v568 = vpack.c.b16 %v504, %v500
      %v569 = vpack.c.b16 %v505, %v501
      %v570 = vpack.c.b16 %v506, %v502
      %v571 = vpack.c.b16 %v507, %v503
      %636 = vmatprep.subr.bf16.mxu0 %v509
      %637 = vmatpush1.bf16.msra.mxu0 %v508
      %638 = vmatprep.subr.bf16.mxu0 %v513
      %639 = vmatpush1.bf16.msra.mxu0 %v512
      %640 = vmatprep.subr.bf16.mxu0 %v517
      %641 = vmatpush1.bf16.msra.mxu0 %v516
      %642 = vmatprep.subr.bf16.mxu0 %v521
      %643 = vmatpush1.bf16.msra.mxu0 %v520
      %644 = vmatprep.subr.bf16.mxu0 %v525
      %645 = vmatpush1.bf16.msra.mxu0 %v524
      %646 = vmatprep.subr.bf16.mxu0 %v529
      %647 = vmatpush1.bf16.msra.mxu0 %v528
      %648 = vmatprep.subr.bf16.mxu0 %v533
      %649 = vmatpush1.bf16.msra.mxu0 %v532
      %650 = vmatprep.subr.bf16.mxu0 %v537
      %651 = vmatpush1.bf16.msra.mxu0 %v536
      %652 = vmatprep.subr.bf16.mxu0 %v541
      %653 = vmatpush1.bf16.msra.mxu0 %v540
      %654 = vmatprep.subr.bf16.mxu0 %v545
      %655 = vmatpush1.bf16.msra.mxu0 %v544
      %656 = vmatprep.subr.bf16.mxu0 %v549
      %657 = vmatpush1.bf16.msra.mxu0 %v548
      %658 = vmatprep.subr.bf16.mxu0 %v553
      %659 = vmatpush1.bf16.msra.mxu0 %v552
      %660 = vmatprep.subr.bf16.mxu0 %v557
      %661 = vmatpush1.bf16.msra.mxu0 %v556
      %662 = vmatprep.subr.bf16.mxu0 %v561
      %663 = vmatpush1.bf16.msra.mxu0 %v560
      %664 = vmatprep.subr.bf16.mxu0 %v565
      %665 = vmatpush1.bf16.msra.mxu0 %v564
      %666 = vmatprep.subr.bf16.mxu0 %v569
      %667 = vmatpush1.bf16.msra.mxu0 %v568
      %668 = vmatprep.mubr.bf16.mxu0 %v229
      %669 = vmatmul.mubr.bf16.gmra.mrb[0].mxu0 %v228
      %v670 = vpop.f32.mrb[0].mxu0
      %v671 = vadd.f32 %v299, %v670
      %v672 = vpop.f32.mrb[0].mxu0
      %v673 = vadd.f32 %v303, %v672
      %v674 = vpop.f32.mrb[0].mxu0
      %v675 = vpop.f32.mrb[0].mxu0
      %676 = vdwg.mxu0
      %677 = vmatprep.subr.bf16.mxu0 %v511
      %678 = vmatpush1.bf16.msra.mxu0 %v510
      %679 = vmatprep.subr.bf16.mxu0 %v515
      %680 = vmatpush1.bf16.msra.mxu0 %v514
      %681 = vmatprep.subr.bf16.mxu0 %v519
      %682 = vmatpush1.bf16.msra.mxu0 %v518
      %683 = vmatprep.subr.bf16.mxu0 %v523
      %684 = vmatpush1.bf16.msra.mxu0 %v522
      %685 = vmatprep.subr.bf16.mxu0 %v527
      %686 = vmatpush1.bf16.msra.mxu0 %v526
      %687 = vmatprep.subr.bf16.mxu0 %v531
      %688 = vmatpush1.bf16.msra.mxu0 %v530
      %689 = vmatprep.subr.bf16.mxu0 %v535
      %690 = vmatpush1.bf16.msra.mxu0 %v534
      %691 = vmatprep.subr.bf16.mxu0 %v539
      %692 = vmatpush1.bf16.msra.mxu0 %v538
      %693 = vmatprep.subr.bf16.mxu0 %v543
      %694 = vmatpush1.bf16.msra.mxu0 %v542
      %695 = vmatprep.subr.bf16.mxu0 %v547
      %696 = vmatpush1.bf16.msra.mxu0 %v546
      %697 = vmatprep.subr.bf16.mxu0 %v551
      %698 = vmatpush1.bf16.msra.mxu0 %v550
      %699 = vmatprep.subr.bf16.mxu0 %v555
      %700 = vmatpush1.bf16.msra.mxu0 %v554
      %701 = vmatprep.subr.bf16.mxu0 %v559
      %702 = vmatpush1.bf16.msra.mxu0 %v558
      %703 = vmatprep.subr.bf16.mxu0 %v563
      %704 = vmatpush1.bf16.msra.mxu0 %v562
      %705 = vmatprep.subr.bf16.mxu0 %v567
      %706 = vmatpush1.bf16.msra.mxu0 %v566
      %707 = vmatprep.subr.bf16.mxu0 %v571
      %708 = vmatpush1.bf16.msra.mxu0 %v570
      %709 = vmatprep.mubr.bf16.mxu0 %v229
      %710 = vmatmul.mubr.bf16.gmra.mrb[0].mxu0 %v228
      %v711 = vpop.f32.mrb[0].mxu0
      %v712 = vadd.f32 %v307, %v711
      %v713 = vpop.f32.mrb[0].mxu0
      %v714 = vadd.f32 %v311, %v713
      %v715 = vpop.f32.mrb[0].mxu0
      %v716 = vpop.f32.mrb[0].mxu0
      %717 = vdwg.mxu0
      %v718 = vmul.f32 %v671, 0.01
      %v719 = vmul.f32 %v673, 0.01
      %v720 = vmul.f32 %v712, 0.01
      %v721 = vmul.f32 %v714, 0.01
      %v722 = vmax.f32 %v671, %v718
      %v723 = vmax.f32 %v673, %v719
      %v724 = vmax.f32 %v712, %v720
      %v725 = vmax.f32 %v714, %v721
      %v726 = vpack.c.bf16 %v722, %v722
      %v727 = vpack.c.bf16 %v723, %v723
      %v728 = vpack.c.bf16 %v724, %v724
      %v729 = vpack.c.bf16 %v725, %v725
      %v730 = vld [vmem:[%s3] sm:$0xff]
      %v731 = vld [vmem:[%s3 + $0x8] sm:$0xf]
      %v732 = vld [vmem:[%s3 + $0xc] sm:$0xff]
      %v733 = vld [vmem:[%s3 + $0x14] sm:$0xf]
      %v734 = vld [vmem:[%s3 + $0x18] sm:$0xff]
      %v735 = vld [vmem:[%s3 + $0x20] sm:$0xf]
      %v736 = vld [vmem:[%s3 + $0x24] sm:$0xff]
      %v737 = vld [vmem:[%s3 + $0x2c] sm:$0xf]
      %v738 = vld [vmem:[%s3 + $0x30] sm:$0xff]
      %v739 = vld [vmem:[%s3 + $0x38] sm:$0xf]
      %v740 = vld [vmem:[%s3 + $0x3c] sm:$0xff]
      %v741 = vld [vmem:[%s3 + $0x44] sm:$0xf]
      %v742 = vld [vmem:[%s3 + $0x48] sm:$0xff]
      %v743 = vld [vmem:[%s3 + $0x50] sm:$0xf]
      %v744 = vld [vmem:[%s3 + $0x54] sm:$0xff]
      %v745 = vld [vmem:[%s3 + $0x5c] sm:$0xf]
      %v746 = vld [vmem:[%s3 + $0x60] sm:$0xff]
      %v747 = vld [vmem:[%s3 + $0x68] sm:$0xf]
      %v748 = vld [vmem:[%s3 + $0x6c] sm:$0xff]
      %v749 = vld [vmem:[%s3 + $0x74] sm:$0xf]
      %v750 = vld [vmem:[%s3 + $0x78] sm:$0xff]
      %v751 = vld [vmem:[%s3 + $0x80] sm:$0xf]
      %v752 = vld [vmem:[%s3 + $0x84] sm:$0xff]
      %v753 = vld [vmem:[%s3 + $0x8c] sm:$0xf]
      %v754 = vld [vmem:[%s3 + $0x90] sm:$0xff]
      %v755 = vld [vmem:[%s3 + $0x98] sm:$0xf]
      %v756 = vld [vmem:[%s3 + $0x9c] sm:$0xff]
      %v757 = vld [vmem:[%s3 + $0xa4] sm:$0xf]
      %v758 = vld [vmem:[%s3 + $0xa8] sm:$0xff]
      %v759 = vld [vmem:[%s3 + $0xb0] sm:$0xf]
      %v760 = vld [vmem:[%s3 + $0xb4] sm:$0xff]
      %v761 = vld [vmem:[%s3 + $0xbc] sm:$0xf]
      %v762 = vld [vmem:[%s3 + $0xc0] sm:$0xff]
      %v763 = vld [vmem:[%s3 + $0xc8] sm:$0xf]
      %v764 = vld [vmem:[%s3 + $0xcc] sm:$0xff]
      %v765 = vld [vmem:[%s3 + $0xd4] sm:$0xf]
      %v766 = vld [vmem:[%s3 + $0xd8] sm:$0xff]
      %v767 = vld [vmem:[%s3 + $0xe0] sm:$0xf]
      %v768 = vld [vmem:[%s3 + $0xe4] sm:$0xff]
      %v769 = vld [vmem:[%s3 + $0xec] sm:$0xf]
      %v770 = vld [vmem:[%s3 + $0xf0] sm:$0xff]
      %v771 = vld [vmem:[%s3 + $0xf8] sm:$0xf]
      %v772 = vld [vmem:[%s3 + $0xfc] sm:$0xff]
      %v773 = vld [vmem:[%s3 + $0x104] sm:$0xf]
      %v774 = vld [vmem:[%s3 + $0x108] sm:$0xff]
      %v775 = vld [vmem:[%s3 + $0x110] sm:$0xf]
      %v776 = vld [vmem:[%s3 + $0x114] sm:$0xff]
      %v777 = vld [vmem:[%s3 + $0x11c] sm:$0xf]
      %v778 = vld [vmem:[%s3 + $0x120] sm:$0xff]
      %v779 = vld [vmem:[%s3 + $0x128] sm:$0xf]
      %v780 = vld [vmem:[%s3 + $0x12c] sm:$0xff]
      %v781 = vld [vmem:[%s3 + $0x134] sm:$0xf]
      %v782 = vld [vmem:[%s3 + $0x138] sm:$0xff]
      %v783 = vld [vmem:[%s3 + $0x140] sm:$0xf]
      %v784 = vld [vmem:[%s3 + $0x144] sm:$0xff]
      %v785 = vld [vmem:[%s3 + $0x14c] sm:$0xf]
      %v786 = vld [vmem:[%s3 + $0x150] sm:$0xff]
      %v787 = vld [vmem:[%s3 + $0x158] sm:$0xf]
      %v788 = vld [vmem:[%s3 + $0x15c] sm:$0xff]
      %v789 = vld [vmem:[%s3 + $0x164] sm:$0xf]
      %v790 = vld [vmem:[%s3 + $0x168] sm:$0xff]
      %v791 = vld [vmem:[%s3 + $0x170] sm:$0xf]
      %v792 = vld [vmem:[%s3 + $0x174] sm:$0xff]
      %v793 = vld [vmem:[%s3 + $0x17c] sm:$0xf]
      %v794 = vld [vmem:[%s3 + $0x180] sm:$0xff]
      %v795 = vld [vmem:[%s3 + $0x188] sm:$0xf]
      %v796 = vld [vmem:[%s3 + $0x18c] sm:$0xff]
      %v797 = vld [vmem:[%s3 + $0x194] sm:$0xf]
      %v798 = vld [vmem:[%s3 + $0x198] sm:$0xff]
      %v799 = vld [vmem:[%s3 + $0x1a0] sm:$0xf]
      %v800 = vld [vmem:[%s3 + $0x1a4] sm:$0xff]
      %v801 = vld [vmem:[%s3 + $0x1ac] sm:$0xf]
      %v802 = vld [vmem:[%s3 + $0x1b0] sm:$0xff]
      %v803 = vld [vmem:[%s3 + $0x1b8] sm:$0xf]
      %v804 = vld [vmem:[%s3 + $0x1bc] sm:$0xff]
      %v805 = vld [vmem:[%s3 + $0x1c4] sm:$0xf]
      %v806 = vld [vmem:[%s3 + $0x1c8] sm:$0xff]
      %v807 = vld [vmem:[%s3 + $0x1d0] sm:$0xf]
      %v808 = vld [vmem:[%s3 + $0x1d4] sm:$0xff]
      %v809 = vld [vmem:[%s3 + $0x1dc] sm:$0xf]
      %v810 = vld [vmem:[%s3 + $0x1e0] sm:$0xff]
      %v811 = vld [vmem:[%s3 + $0x1e8] sm:$0xf]
      %v812 = vld [vmem:[%s3 + $0x1ec] sm:$0xff]
      %v813 = vld [vmem:[%s3 + $0x1f4] sm:$0xf]
      %v814 = vld [vmem:[%s3 + $0x1f8] sm:$0xff]
      %v815 = vld [vmem:[%s3 + $0x200] sm:$0xf]
      %v816 = vld [vmem:[%s3 + $0x204] sm:$0xff]
      %v817 = vld [vmem:[%s3 + $0x20c] sm:$0xf]
      %v818 = vld [vmem:[%s3 + $0x210] sm:$0xff]
      %v819 = vld [vmem:[%s3 + $0x218] sm:$0xf]
      %v820 = vld [vmem:[%s3 + $0x21c] sm:$0xff]
      %v821 = vld [vmem:[%s3 + $0x224] sm:$0xf]
      %v822 = vld [vmem:[%s3 + $0x228] sm:$0xff]
      %v823 = vld [vmem:[%s3 + $0x230] sm:$0xf]
      %v824 = vld [vmem:[%s3 + $0x234] sm:$0xff]
      %v825 = vld [vmem:[%s3 + $0x23c] sm:$0xf]
      %v826 = vld [vmem:[%s3 + $0x240] sm:$0xff]
      %v827 = vld [vmem:[%s3 + $0x248] sm:$0xf]
      %v828 = vld [vmem:[%s3 + $0x24c] sm:$0xff]
      %v829 = vld [vmem:[%s3 + $0x254] sm:$0xf]
      %v830 = vld [vmem:[%s3 + $0x258] sm:$0xff]
      %v831 = vld [vmem:[%s3 + $0x260] sm:$0xf]
      %v832 = vld [vmem:[%s3 + $0x264] sm:$0xff]
      %v833 = vld [vmem:[%s3 + $0x26c] sm:$0xf]
      %v834 = vld [vmem:[%s3 + $0x270] sm:$0xff]
      %v835 = vld [vmem:[%s3 + $0x278] sm:$0xf]
      %v836 = vld [vmem:[%s3 + $0x27c] sm:$0xff]
      %v837 = vld [vmem:[%s3 + $0x284] sm:$0xf]
      %v838 = vld [vmem:[%s3 + $0x288] sm:$0xff]
      %v839 = vld [vmem:[%s3 + $0x290] sm:$0xf]
      %v840 = vld [vmem:[%s3 + $0x294] sm:$0xff]
      %v841 = vld [vmem:[%s3 + $0x29c] sm:$0xf]
      %v842 = vld [vmem:[%s3 + $0x2a0] sm:$0xff]
      %v843 = vld [vmem:[%s3 + $0x2a8] sm:$0xf]
      %v844 = vld [vmem:[%s3 + $0x2ac] sm:$0xff]
      %v845 = vld [vmem:[%s3 + $0x2b4] sm:$0xf]
      %v846 = vld [vmem:[%s3 + $0x2b8] sm:$0xff]
      %v847 = vld [vmem:[%s3 + $0x2c0] sm:$0xf]
      %v848 = vld [vmem:[%s3 + $0x2c4] sm:$0xff]
      %v849 = vld [vmem:[%s3 + $0x2cc] sm:$0xf]
      %v850 = vld [vmem:[%s3 + $0x2d0] sm:$0xff]
      %v851 = vld [vmem:[%s3 + $0x2d8] sm:$0xf]
      %v852 = vld [vmem:[%s3 + $0x2dc] sm:$0xff]
      %v853 = vld [vmem:[%s3 + $0x2e4] sm:$0xf]
      %v854 = vld [vmem:[%s3 + $0x2e8] sm:$0xff]
      %v855 = vld [vmem:[%s3 + $0x2f0] sm:$0xf]
      %v856 = vld [vmem:[%s3 + $0x2f4] sm:$0xff]
      %v857 = vld [vmem:[%s3 + $0x2fc] sm:$0xf]
      %v858 = vld [vmem:[%s4] sm:$0x7]
      %v860 = vlaneseq
      %v861 = vshrl.u32 %v860, 7
      %v862 = vsub.s32 0, %v861
      %v863 = vrot.slane %v858, %v862
      %v864 = vlaneseq
      %v865 = vshrl.u32 %v864, 7
      %v866 = vsub.s32 1, %v865
      %v867 = vrot.slane %v858, %v866
      %v868 = vlaneseq
      %v869 = vshrl.u32 %v868, 7
      %v870 = vsub.s32 2, %v869
      %v871 = vrot.slane %v858, %v870
      %v1003 = vunpack.c.l.b16 %v730
      %v1004 = vunpack.c.h.b16 %v730
      %v1005 = vunpack.c.l.b16 %v731
      %v1006 = vunpack.c.l.b16 %v732
      %v1007 = vunpack.c.h.b16 %v732
      %v1008 = vunpack.c.l.b16 %v733
      %v1009 = vunpack.c.l.b16 %v734
      %v1010 = vunpack.c.h.b16 %v734
      %v1011 = vunpack.c.l.b16 %v735
      %v1012 = vunpack.c.l.b16 %v736
      %v1013 = vunpack.c.h.b16 %v736
      %v1014 = vunpack.c.l.b16 %v737
      %v1015 = vunpack.c.l.b16 %v738
      %v1016 = vunpack.c.h.b16 %v738
      %v1017 = vunpack.c.l.b16 %v739
      %v1018 = vunpack.c.l.b16 %v740
      %v1019 = vunpack.c.h.b16 %v740
      %v1020 = vunpack.c.l.b16 %v741
      %v1021 = vunpack.c.l.b16 %v742
      %v1022 = vunpack.c.h.b16 %v742
      %v1023 = vunpack.c.l.b16 %v743
      %v1024 = vunpack.c.l.b16 %v744
      %v1025 = vunpack.c.h.b16 %v744
      %v1026 = vunpack.c.l.b16 %v745
      %v1027 = vunpack.c.l.b16 %v746
      %v1028 = vunpack.c.h.b16 %v746
      %v1029 = vunpack.c.l.b16 %v747
      %v1030 = vunpack.c.l.b16 %v748
      %v1031 = vunpack.c.h.b16 %v748
      %v1032 = vunpack.c.l.b16 %v749
      %v1033 = vunpack.c.l.b16 %v750
      %v1034 = vunpack.c.h.b16 %v750
      %v1035 = vunpack.c.l.b16 %v751
      %v1036 = vunpack.c.l.b16 %v752
      %v1037 = vunpack.c.h.b16 %v752
      %v1038 = vunpack.c.l.b16 %v753
      %v1039 = vunpack.c.l.b16 %v754
      %v1040 = vunpack.c.h.b16 %v754
      %v1041 = vunpack.c.l.b16 %v755
      %v1042 = vunpack.c.l.b16 %v756
      %v1043 = vunpack.c.h.b16 %v756
      %v1044 = vunpack.c.l.b16 %v757
      %v1045 = vunpack.c.l.b16 %v758
      %v1046 = vunpack.c.h.b16 %v758
      %v1047 = vunpack.c.l.b16 %v759
      %v1048 = vunpack.c.l.b16 %v760
      %v1049 = vunpack.c.h.b16 %v760
      %v1050 = vunpack.c.l.b16 %v761
      %v1051 = vunpack.c.l.b16 %v762
      %v1052 = vunpack.c.h.b16 %v762
      %v1053 = vunpack.c.l.b16 %v763
      %v1054 = vunpack.c.l.b16 %v764
      %v1055 = vunpack.c.h.b16 %v764
      %v1056 = vunpack.c.l.b16 %v765
      %v1057 = vunpack.c.l.b16 %v766
      %v1058 = vunpack.c.h.b16 %v766
      %v1059 = vunpack.c.l.b16 %v767
      %v1060 = vunpack.c.l.b16 %v768
      %v1061 = vunpack.c.h.b16 %v768
      %v1062 = vunpack.c.l.b16 %v769
      %v1063 = vunpack.c.l.b16 %v770
      %v1064 = vunpack.c.h.b16 %v770
      %v1065 = vunpack.c.l.b16 %v771
      %v1066 = vunpack.c.l.b16 %v772
      %v1067 = vunpack.c.h.b16 %v772
      %v1068 = vunpack.c.l.b16 %v773
      %v1069 = vunpack.c.l.b16 %v774
      %v1070 = vunpack.c.h.b16 %v774
      %v1071 = vunpack.c.l.b16 %v775
      %v1072 = vunpack.c.l.b16 %v776
      %v1073 = vunpack.c.h.b16 %v776
      %v1074 = vunpack.c.l.b16 %v777
      %v1075 = vunpack.c.l.b16 %v778
      %v1076 = vunpack.c.h.b16 %v778
      %v1077 = vunpack.c.l.b16 %v779
      %v1078 = vunpack.c.l.b16 %v780
      %v1079 = vunpack.c.h.b16 %v780
      %v1080 = vunpack.c.l.b16 %v781
      %v1081 = vunpack.c.l.b16 %v782
      %v1082 = vunpack.c.h.b16 %v782
      %v1083 = vunpack.c.l.b16 %v783
      %v1084 = vunpack.c.l.b16 %v784
      %v1085 = vunpack.c.h.b16 %v784
      %v1086 = vunpack.c.l.b16 %v785
      %v1087 = vunpack.c.l.b16 %v786
      %v1088 = vunpack.c.h.b16 %v786
      %v1089 = vunpack.c.l.b16 %v787
      %v1090 = vunpack.c.l.b16 %v788
      %v1091 = vunpack.c.h.b16 %v788
      %v1092 = vunpack.c.l.b16 %v789
      %v1093 = vunpack.c.l.b16 %v790
      %v1094 = vunpack.c.h.b16 %v790
      %v1095 = vunpack.c.l.b16 %v791
      %v1096 = vunpack.c.l.b16 %v792
      %v1097 = vunpack.c.h.b16 %v792
      %v1098 = vunpack.c.l.b16 %v793
      %v1099 = vunpack.c.l.b16 %v794
      %v1100 = vunpack.c.h.b16 %v794
      %v1101 = vunpack.c.l.b16 %v795
      %v1102 = vunpack.c.l.b16 %v796
      %v1103 = vunpack.c.h.b16 %v796
      %v1104 = vunpack.c.l.b16 %v797
      %v1105 = vunpack.c.l.b16 %v798
      %v1106 = vunpack.c.h.b16 %v798
      %v1107 = vunpack.c.l.b16 %v799
      %v1108 = vunpack.c.l.b16 %v800
      %v1109 = vunpack.c.h.b16 %v800
      %v1110 = vunpack.c.l.b16 %v801
      %v1111 = vunpack.c.l.b16 %v802
      %v1112 = vunpack.c.h.b16 %v802
      %v1113 = vunpack.c.l.b16 %v803
      %v1114 = vunpack.c.l.b16 %v804
      %v1115 = vunpack.c.h.b16 %v804
      %v1116 = vunpack.c.l.b16 %v805
      %v1117 = vunpack.c.l.b16 %v806
      %v1118 = vunpack.c.h.b16 %v806
      %v1119 = vunpack.c.l.b16 %v807
      %v1120 = vunpack.c.l.b16 %v808
      %v1121 = vunpack.c.h.b16 %v808
      %v1122 = vunpack.c.l.b16 %v809
      %v1123 = vunpack.c.l.b16 %v810
      %v1124 = vunpack.c.h.b16 %v810
      %v1125 = vunpack.c.l.b16 %v811
      %v1126 = vunpack.c.l.b16 %v812
      %v1127 = vunpack.c.h.b16 %v812
      %v1128 = vunpack.c.l.b16 %v813
      %v1129 = vunpack.c.l.b16 %v814
      %v1130 = vunpack.c.h.b16 %v814
      %v1131 = vunpack.c.l.b16 %v815
      %v1132 = vunpack.c.l.b16 %v816
      %v1133 = vunpack.c.h.b16 %v816
      %v1134 = vunpack.c.l.b16 %v817
      %v1135 = vunpack.c.l.b16 %v818
      %v1136 = vunpack.c.h.b16 %v818
      %v1137 = vunpack.c.l.b16 %v819
      %v1138 = vunpack.c.l.b16 %v820
      %v1139 = vunpack.c.h.b16 %v820
      %v1140 = vunpack.c.l.b16 %v821
      %v1141 = vunpack.c.l.b16 %v822
      %v1142 = vunpack.c.h.b16 %v822
      %v1143 = vunpack.c.l.b16 %v823
      %v1144 = vunpack.c.l.b16 %v824
      %v1145 = vunpack.c.h.b16 %v824
      %v1146 = vunpack.c.l.b16 %v825
      %v1147 = vunpack.c.l.b16 %v826
      %v1148 = vunpack.c.h.b16 %v826
      %v1149 = vunpack.c.l.b16 %v827
      %v1150 = vunpack.c.l.b16 %v828
      %v1151 = vunpack.c.h.b16 %v828
      %v1152 = vunpack.c.l.b16 %v829
      %v1153 = vunpack.c.l.b16 %v830
      %v1154 = vunpack.c.h.b16 %v830
      %v1155 = vunpack.c.l.b16 %v831
      %v1156 = vunpack.c.l.b16 %v832
      %v1157 = vunpack.c.h.b16 %v832
      %v1158 = vunpack.c.l.b16 %v833
      %v1159 = vunpack.c.l.b16 %v834
      %v1160 = vunpack.c.h.b16 %v834
      %v1161 = vunpack.c.l.b16 %v835
      %v1162 = vunpack.c.l.b16 %v836
      %v1163 = vunpack.c.h.b16 %v836
      %v1164 = vunpack.c.l.b16 %v837
      %v1165 = vunpack.c.l.b16 %v838
      %v1166 = vunpack.c.h.b16 %v838
      %v1167 = vunpack.c.l.b16 %v839
      %v1168 = vunpack.c.l.b16 %v840
      %v1169 = vunpack.c.h.b16 %v840
      %v1170 = vunpack.c.l.b16 %v841
      %v1171 = vunpack.c.l.b16 %v842
      %v1172 = vunpack.c.h.b16 %v842
      %v1173 = vunpack.c.l.b16 %v843
      %v1174 = vunpack.c.l.b16 %v844
      %v1175 = vunpack.c.h.b16 %v844
      %v1176 = vunpack.c.l.b16 %v845
      %v1177 = vunpack.c.l.b16 %v846
      %v1178 = vunpack.c.h.b16 %v846
      %v1179 = vunpack.c.l.b16 %v847
      %v1180 = vunpack.c.l.b16 %v848
      %v1181 = vunpack.c.h.b16 %v848
      %v1182 = vunpack.c.l.b16 %v849
      %v1183 = vunpack.c.l.b16 %v850
      %v1184 = vunpack.c.h.b16 %v850
      %v1185 = vunpack.c.l.b16 %v851
      %v1186 = vunpack.c.l.b16 %v852
      %v1187 = vunpack.c.h.b16 %v852
      %v1188 = vunpack.c.l.b16 %v853
      %v1189 = vunpack.c.l.b16 %v854
      %v1190 = vunpack.c.h.b16 %v854
      %v1191 = vunpack.c.l.b16 %v855
      %v1192 = vunpack.c.l.b16 %v856
      %v1193 = vunpack.c.h.b16 %v856
      %v1194 = vunpack.c.l.b16 %v857
      %v1195 = vpack.c.b16 %v1006, %v1003
      %v1196 = vpack.c.b16 %v1007, %v1004
      %v1197 = vpack.c.b16 %v1008, %v1005
      %v1198 = vpack.c.b16 %v1012, %v1009
      %v1199 = vpack.c.b16 %v1013, %v1010
      %v1200 = vpack.c.b16 %v1014, %v1011
      %v1201 = vpack.c.b16 %v1018, %v1015
      %v1202 = vpack.c.b16 %v1019, %v1016
      %v1203 = vpack.c.b16 %v1020, %v1017
      %v1204 = vpack.c.b16 %v1024, %v1021
      %v1205 = vpack.c.b16 %v1025, %v1022
      %v1206 = vpack.c.b16 %v1026, %v1023
      %v1207 = vpack.c.b16 %v1030, %v1027
      %v1208 = vpack.c.b16 %v1031, %v1028
      %v1209 = vpack.c.b16 %v1032, %v1029
      %v1210 = vpack.c.b16 %v1036, %v1033
      %v1211 = vpack.c.b16 %v1037, %v1034
      %v1212 = vpack.c.b16 %v1038, %v1035
      %v1213 = vpack.c.b16 %v1042, %v1039
      %v1214 = vpack.c.b16 %v1043, %v1040
      %v1215 = vpack.c.b16 %v1044, %v1041
      %v1216 = vpack.c.b16 %v1048, %v1045
      %v1217 = vpack.c.b16 %v1049, %v1046
      %v1218 = vpack.c.b16 %v1050, %v1047
      %v1219 = vpack.c.b16 %v1054, %v1051
      %v1220 = vpack.c.b16 %v1055, %v1052
      %v1221 = vpack.c.b16 %v1056, %v1053
      %v1222 = vpack.c.b16 %v1060, %v1057
      %v1223 = vpack.c.b16 %v1061, %v1058
      %v1224 = vpack.c.b16 %v1062, %v1059
      %v1225 = vpack.c.b16 %v1066, %v1063
      %v1226 = vpack.c.b16 %v1067, %v1064
      %v1227 = vpack.c.b16 %v1068, %v1065
      %v1228 = vpack.c.b16 %v1072, %v1069
      %v1229 = vpack.c.b16 %v1073, %v1070
      %v1230 = vpack.c.b16 %v1074, %v1071
      %v1231 = vpack.c.b16 %v1078, %v1075
      %v1232 = vpack.c.b16 %v1079, %v1076
      %v1233 = vpack.c.b16 %v1080, %v1077
      %v1234 = vpack.c.b16 %v1084, %v1081
      %v1235 = vpack.c.b16 %v1085, %v1082
      %v1236 = vpack.c.b16 %v1086, %v1083
      %v1237 = vpack.c.b16 %v1090, %v1087
      %v1238 = vpack.c.b16 %v1091, %v1088
      %v1239 = vpack.c.b16 %v1092, %v1089
      %v1240 = vpack.c.b16 %v1096, %v1093
      %v1241 = vpack.c.b16 %v1097, %v1094
      %v1242 = vpack.c.b16 %v1098, %v1095
      %v1243 = vpack.c.b16 %v1102, %v1099
      %v1244 = vpack.c.b16 %v1103, %v1100
      %v1245 = vpack.c.b16 %v1104, %v1101
      %v1246 = vpack.c.b16 %v1108, %v1105
      %v1247 = vpack.c.b16 %v1109, %v1106
      %v1248 = vpack.c.b16 %v1110, %v1107
      %v1249 = vpack.c.b16 %v1114, %v1111
      %v1250 = vpack.c.b16 %v1115, %v1112
      %v1251 = vpack.c.b16 %v1116, %v1113
      %v1252 = vpack.c.b16 %v1120, %v1117
      %v1253 = vpack.c.b16 %v1121, %v1118
      %v1254 = vpack.c.b16 %v1122, %v1119
      %v1255 = vpack.c.b16 %v1126, %v1123
      %v1256 = vpack.c.b16 %v1127, %v1124
      %v1257 = vpack.c.b16 %v1128, %v1125
      %v1258 = vpack.c.b16 %v1132, %v1129
      %v1259 = vpack.c.b16 %v1133, %v1130
      %v1260 = vpack.c.b16 %v1134, %v1131
      %v1261 = vpack.c.b16 %v1138, %v1135
      %v1262 = vpack.c.b16 %v1139, %v1136
      %v1263 = vpack.c.b16 %v1140, %v1137
      %v1264 = vpack.c.b16 %v1144, %v1141
      %v1265 = vpack.c.b16 %v1145, %v1142
      %v1266 = vpack.c.b16 %v1146, %v1143
      %v1267 = vpack.c.b16 %v1150, %v1147
      %v1268 = vpack.c.b16 %v1151, %v1148
      %v1269 = vpack.c.b16 %v1152, %v1149
      %v1270 = vpack.c.b16 %v1156, %v1153
      %v1271 = vpack.c.b16 %v1157, %v1154
      %v1272 = vpack.c.b16 %v1158, %v1155
      %v1273 = vpack.c.b16 %v1162, %v1159
      %v1274 = vpack.c.b16 %v1163, %v1160
      %v1275 = vpack.c.b16 %v1164, %v1161
      %v1276 = vpack.c.b16 %v1168, %v1165
      %v1277 = vpack.c.b16 %v1169, %v1166
      %v1278 = vpack.c.b16 %v1170, %v1167
      %v1279 = vpack.c.b16 %v1174, %v1171
      %v1280 = vpack.c.b16 %v1175, %v1172
      %v1281 = vpack.c.b16 %v1176, %v1173
      %v1282 = vpack.c.b16 %v1180, %v1177
      %v1283 = vpack.c.b16 %v1181, %v1178
      %v1284 = vpack.c.b16 %v1182, %v1179
      %v1285 = vpack.c.b16 %v1186, %v1183
      %v1286 = vpack.c.b16 %v1187, %v1184
      %v1287 = vpack.c.b16 %v1188, %v1185
      %v1288 = vpack.c.b16 %v1192, %v1189
      %v1289 = vpack.c.b16 %v1193, %v1190
      %v1290 = vpack.c.b16 %v1194, %v1191
      %1387 = vmatprep.subr.bf16.mxu0 %v1196
      %1388 = vmatpush1.bf16.msra.mxu0 %v1195
      %1389 = vmatprep.subr.bf16.mxu0 %v1199
      %1390 = vmatpush1.bf16.msra.mxu0 %v1198
      %1391 = vmatprep.subr.bf16.mxu0 %v1202
      %1392 = vmatpush1.bf16.msra.mxu0 %v1201
      %1393 = vmatprep.subr.bf16.mxu0 %v1205
      %1394 = vmatpush1.bf16.msra.mxu0 %v1204
      %1395 = vmatprep.subr.bf16.mxu0 %v1208
      %1396 = vmatpush1.bf16.msra.mxu0 %v1207
      %1397 = vmatprep.subr.bf16.mxu0 %v1211
      %1398 = vmatpush1.bf16.msra.mxu0 %v1210
      %1399 = vmatprep.subr.bf16.mxu0 %v1214
      %1400 = vmatpush1.bf16.msra.mxu0 %v1213
      %1401 = vmatprep.subr.bf16.mxu0 %v1217
      %1402 = vmatpush1.bf16.msra.mxu0 %v1216
      %1403 = vmatprep.subr.bf16.mxu0 %v1220
      %1404 = vmatpush1.bf16.msra.mxu0 %v1219
      %1405 = vmatprep.subr.bf16.mxu0 %v1223
      %1406 = vmatpush1.bf16.msra.mxu0 %v1222
      %1407 = vmatprep.subr.bf16.mxu0 %v1226
      %1408 = vmatpush1.bf16.msra.mxu0 %v1225
      %1409 = vmatprep.subr.bf16.mxu0 %v1229
      %1410 = vmatpush1.bf16.msra.mxu0 %v1228
      %1411 = vmatprep.subr.bf16.mxu0 %v1232
      %1412 = vmatpush1.bf16.msra.mxu0 %v1231
      %1413 = vmatprep.subr.bf16.mxu0 %v1235
      %1414 = vmatpush1.bf16.msra.mxu0 %v1234
      %1415 = vmatprep.subr.bf16.mxu0 %v1238
      %1416 = vmatpush1.bf16.msra.mxu0 %v1237
      %1417 = vmatprep.subr.bf16.mxu0 %v1241
      %1418 = vmatpush1.bf16.msra.mxu0 %v1240
      %1419 = vmatprep.mubr.bf16.mxu0 %v727
      %1420 = vmatmul.mubr.bf16.gmra.mrb[0].mxu0 %v726
      %v1421 = vpop.f32.mrb[0].mxu0
      %v1422 = vadd.f32 %v863, %v1421
      %v1423 = vpop.f32.mrb[0].mxu0
      %v1424 = vadd.f32 %v867, %v1423
      %v1425 = vpop.f32.mrb[0].mxu0
      %v1426 = vpop.f32.mrb[0].mxu0
      %1427 = vdwg.mxu0
      %1428 = vmatprep.subr.bf16.mxu0 %v1244
      %1429 = vmatpush1.bf16.msra.mxu0 %v1243
      %1430 = vmatprep.subr.bf16.mxu0 %v1247
      %1431 = vmatpush1.bf16.msra.mxu0 %v1246
      %1432 = vmatprep.subr.bf16.mxu0 %v1250
      %1433 = vmatpush1.bf16.msra.mxu0 %v1249
      %1434 = vmatprep.subr.bf16.mxu0 %v1253
      %1435 = vmatpush1.bf16.msra.mxu0 %v1252
      %1436 = vmatprep.subr.bf16.mxu0 %v1256
      %1437 = vmatpush1.bf16.msra.mxu0 %v1255
      %1438 = vmatprep.subr.bf16.mxu0 %v1259
      %1439 = vmatpush1.bf16.msra.mxu0 %v1258
      %1440 = vmatprep.subr.bf16.mxu0 %v1262
      %1441 = vmatpush1.bf16.msra.mxu0 %v1261
      %1442 = vmatprep.subr.bf16.mxu0 %v1265
      %1443 = vmatpush1.bf16.msra.mxu0 %v1264
      %1444 = vmatprep.subr.bf16.mxu0 %v1268
      %1445 = vmatpush1.bf16.msra.mxu0 %v1267
      %1446 = vmatprep.subr.bf16.mxu0 %v1271
      %1447 = vmatpush1.bf16.msra.mxu0 %v1270
      %1448 = vmatprep.subr.bf16.mxu0 %v1274
      %1449 = vmatpush1.bf16.msra.mxu0 %v1273
      %1450 = vmatprep.subr.bf16.mxu0 %v1277
      %1451 = vmatpush1.bf16.msra.mxu0 %v1276
      %1452 = vmatprep.subr.bf16.mxu0 %v1280
      %1453 = vmatpush1.bf16.msra.mxu0 %v1279
      %1454 = vmatprep.subr.bf16.mxu0 %v1283
      %1455 = vmatpush1.bf16.msra.mxu0 %v1282
      %1456 = vmatprep.subr.bf16.mxu0 %v1286
      %1457 = vmatpush1.bf16.msra.mxu0 %v1285
      %1458 = vmatprep.subr.bf16.mxu0 %v1289
      %1459 = vmatpush1.bf16.msra.mxu0 %v1288
      %1460 = vmatprep.mubr.bf16.mxu0 %v729
      %1461 = vmatmul.mubr.bf16.gmra.mrb[0].mxu0 %v728
      %v1462 = vpop.f32.mrb[0].mxu0
      %v1463 = vadd.f32 %v1422, %v1462
      %v1464 = vpop.f32.mrb[0].mxu0
      %v1465 = vadd.f32 %v1424, %v1464
      %v1466 = vpop.f32.mrb[0].mxu0
      %v1467 = vpop.f32.mrb[0].mxu0
      %1468 = vdwg.mxu0
      %1469 = vmatprep.subr.bf16.mxu0 0
      %1470 = vmatpush1.bf16.msra.mxu0 %v1197
      %1471 = vmatprep.subr.bf16.mxu0 0
      %1472 = vmatpush1.bf16.msra.mxu0 %v1200
      %1473 = vmatprep.subr.bf16.mxu0 0
      %1474 = vmatpush1.bf16.msra.mxu0 %v1203
      %1475 = vmatprep.subr.bf16.mxu0 0
      %1476 = vmatpush1.bf16.msra.mxu0 %v1206
      %1477 = vmatprep.subr.bf16.mxu0 0
      %1478 = vmatpush1.bf16.msra.mxu0 %v1209
      %1479 = vmatprep.subr.bf16.mxu0 0
      %1480 = vmatpush1.bf16.msra.mxu0 %v1212
      %1481 = vmatprep.subr.bf16.mxu0 0
      %1482 = vmatpush1.bf16.msra.mxu0 %v1215
      %1483 = vmatprep.subr.bf16.mxu0 0
      %1484 = vmatpush1.bf16.msra.mxu0 %v1218
      %1485 = vmatprep.subr.bf16.mxu0 0
      %1486 = vmatpush1.bf16.msra.mxu0 %v1221
      %1487 = vmatprep.subr.bf16.mxu0 0
      %1488 = vmatpush1.bf16.msra.mxu0 %v1224
      %1489 = vmatprep.subr.bf16.mxu0 0
      %1490 = vmatpush1.bf16.msra.mxu0 %v1227
      %1491 = vmatprep.subr.bf16.mxu0 0
      %1492 = vmatpush1.bf16.msra.mxu0 %v1230
      %1493 = vmatprep.subr.bf16.mxu0 0
      %1494 = vmatpush1.bf16.msra.mxu0 %v1233
      %1495 = vmatprep.subr.bf16.mxu0 0
      %1496 = vmatpush1.bf16.msra.mxu0 %v1236
      %1497 = vmatprep.subr.bf16.mxu0 0
      %1498 = vmatpush1.bf16.msra.mxu0 %v1239
      %1499 = vmatprep.subr.bf16.mxu0 0
      %1500 = vmatpush1.bf16.msra.mxu0 %v1242
      %1501 = vmatprep.mubr.bf16.mxu0 %v727
      %1502 = vmatmul.mubr.bf16.gmra.mrb[0].mxu0 %v726
      %v1503 = vpop.f32.mrb[0].mxu0
      %v1504 = vadd.f32 %v871, %v1503
      %v1505 = vpop.f32.mrb[0].mxu0
      %v1506 = vpop.f32.mrb[0].mxu0
      %v1507 = vpop.f32.mrb[0].mxu0
      %1508 = vdwg.mxu0
      %1509 = vmatprep.subr.bf16.mxu0 0
      %1510 = vmatpush1.bf16.msra.mxu0 %v1245
      %1511 = vmatprep.subr.bf16.mxu0 0
      %1512 = vmatpush1.bf16.msra.mxu0 %v1248
      %1513 = vmatprep.subr.bf16.mxu0 0
      %1514 = vmatpush1.bf16.msra.mxu0 %v1251
      %1515 = vmatprep.subr.bf16.mxu0 0
      %1516 = vmatpush1.bf16.msra.mxu0 %v1254
      %1517 = vmatprep.subr.bf16.mxu0 0
      %1518 = vmatpush1.bf16.msra.mxu0 %v1257
      %1519 = vmatprep.subr.bf16.mxu0 0
      %1520 = vmatpush1.bf16.msra.mxu0 %v1260
      %1521 = vmatprep.subr.bf16.mxu0 0
      %1522 = vmatpush1.bf16.msra.mxu0 %v1263
      %1523 = vmatprep.subr.bf16.mxu0 0
      %1524 = vmatpush1.bf16.msra.mxu0 %v1266
      %1525 = vmatprep.subr.bf16.mxu0 0
      %1526 = vmatpush1.bf16.msra.mxu0 %v1269
      %1527 = vmatprep.subr.bf16.mxu0 0
      %1528 = vmatpush1.bf16.msra.mxu0 %v1272
      %1529 = vmatprep.subr.bf16.mxu0 0
      %1530 = vmatpush1.bf16.msra.mxu0 %v1275
      %1531 = vmatprep.subr.bf16.mxu0 0
      %1532 = vmatpush1.bf16.msra.mxu0 %v1278
      %1533 = vmatprep.subr.bf16.mxu0 0
      %1534 = vmatpush1.bf16.msra.mxu0 %v1281
      %1535 = vmatprep.subr.bf16.mxu0 0
      %1536 = vmatpush1.bf16.msra.mxu0 %v1284
      %1537 = vmatprep.subr.bf16.mxu0 0
      %1538 = vmatpush1.bf16.msra.mxu0 %v1287
      %1539 = vmatprep.subr.bf16.mxu0 0
      %1540 = vmatpush1.bf16.msra.mxu0 %v1290
      %1541 = vmatprep.mubr.bf16.mxu0 %v729
      %1542 = vmatmul.mubr.bf16.gmra.mrb[0].mxu0 %v728
      %v1543 = vpop.f32.mrb[0].mxu0
      %v1544 = vadd.f32 %v1504, %v1543
      %v1545 = vpop.f32.mrb[0].mxu0
      %v1546 = vpop.f32.mrb[0].mxu0
      %v1547 = vpop.f32.mrb[0].mxu0
      %1548 = vdwg.mxu0
      %v1549 = vmul.f32 %v1463, 0.01
      %v1550 = vmul.f32 %v1465, 0.01
      %v1551 = vmul.f32 %v1544, 0.01
      %v1552 = vmax.f32 %v1463, %v1549
      %v1553 = vmax.f32 %v1465, %v1550
      %v1554 = vmax.f32 %v1544, %v1551
      %1555 = vst [vmem:[%s224] sm:$0xff] %v1552
      %1556 = vst [vmem:[%s224 + $0x8] sm:$0xff] %v1553
      %1557 = vst [vmem:[%s224 + $0x10] sm:$0xff] %v1554
      %p1558 = scmp.lt.s32.totalorder %s16, 1
      %s1559 = scalar_select %p1558, %s16, 1
      %s1560 = smul.addr %s1559, 3
      %s1561 = smul.addr %s1560, 8
      %s1562 = scalar_lea.vmem %s5, %s1561
      // Predicated region
      $region41: #{edgeconv_mlp.1} parent=39 // pred_check
        %p1563 = pneg %p144
      $region42: #{edgeconv_mlp.1} parent=39 // pred_check_branch
        %1565 = sbr.rel (%p1563) target = $region44
      $region43: #{edgeconv_mlp.1} parent=39 // pred_region
        _
      $region44: #{edgeconv_mlp.1} parent=39 // pred_fallthru
        _
    $region40: #{edgeconv_mlp.1} parent=5 // pred_fallthru
      _
    %p1566 = scmp.le.s32.totalorder 2, %s11
    // Predicated region
    $region45: #{edgeconv_mlp.1} parent=5 // pred_check
      %p1567 = pneg %p1566
    $region46: #{edgeconv_mlp.1} parent=5 // pred_check_branch
      %1569 = sbr.rel (%p1567) target = $region48
    $region47: #{edgeconv_mlp.1} parent=5 // pred_region
      %s1570 = ssub.s32 %s11, 2
      // Predicated region
      $region49: #{edgeconv_mlp.1} parent=47 // pred_check
        %p1571 = pneg %p150
      $region50: #{edgeconv_mlp.1} parent=47 // pred_check_branch
        %1573 = sbr.rel (%p1571) target = $region52
      $region51: #{edgeconv_mlp.1} parent=47 // pred_region
        %p1574 = scmp.lt.s32.totalorder %s17, 1
        %s1575 = scalar_select %p1574, %s17, 1
        %s1576 = smul.addr %s1575, 3
        %s1577 = smul.addr %s1576, 8
        %s1578 = scalar_lea.vmem %s5, %s1577
      $region52: #{edgeconv_mlp.1} parent=47 // pred_fallthru
        _
    $region48: #{edgeconv_mlp.1} parent=5 // pred_fallthru
      _
  $region6: #{edgeconv_mlp.1} parent=0 // loop_footer
    %s15 = sadd.s32 1, %s11
  $region7: #{edgeconv_mlp.1} parent=0 // loop_footer_branch
    %10 = sbr.rel target = $region3
  $region8: #{edgeconv_mlp.1} parent=0 // loop_exit
    _

</llo_original>
